<compile_context>
chip_gen: v7x
topology: tpu7x:2x2x1
jax: 0.10.0
libtpu: 0.0.40
codegen_flags: <defaults>
</compile_context>

<pallas_src>
import functools

import jax
import jax.numpy as jnp
from jax.experimental import pallas as pl
from jax.experimental.pallas import tpu as pltpu


# ----------------------------------------------------------------------------
# helpers
# ----------------------------------------------------------------------------
def _sum_all(x):
    """Full reduction of a 2-D tile to a (1, 1) array (lane then sublane)."""
    return jnp.sum(jnp.sum(x, axis=1, keepdims=True), axis=0, keepdims=True)


def _round_up(x, m):
    return ((x + m - 1) // m) * m


# ----------------------------------------------------------------------------
# fused mel / postnet-mel masked-L1 partial sums (row-tiled, accumulator out)
# ----------------------------------------------------------------------------
def _mel_l1_sums_kernel(mp_ref, pp_ref, mt_ref, mk_ref,
                        mel_sum_ref, post_sum_ref, cnt_ref):
    @pl.when(pl.program_id(0) == 0)
    def _init():
        mel_sum_ref[...] = jnp.zeros_like(mel_sum_ref)
        post_sum_ref[...] = jnp.zeros_like(post_sum_ref)
        cnt_ref[...] = jnp.zeros_like(cnt_ref)

    m = mk_ref[...]                      # (tm, 1) f32, 1.0 == valid frame
    valid = m > 0.5                      # broadcast against (tm, C) below
    mt = mt_ref[...]                     # target read once, used twice (fused)

    d_mel = jnp.where(valid, jnp.abs(mp_ref[...] - mt), 0.0)
    d_post = jnp.where(valid, jnp.abs(pp_ref[...] - mt), 0.0)

    mel_sum_ref[...] += _sum_all(d_mel)
    post_sum_ref[...] += _sum_all(d_post)
    cnt_ref[...] += _sum_all(m)          # number of valid frames


def mel_l1_sums(mel_pred, postnet_pred, mel_tgt, mel_valid_f, row_tile=512):
    """Returns (sum|mel_pred-tgt|, sum|postnet-tgt|, valid_frame_count)."""
    B, T, C = mel_pred.shape
    M = B * T
    mp = mel_pred.reshape(M, C)
    pp = postnet_pred.reshape(M, C)
    mt = mel_tgt.reshape(M, C)
    mk = mel_valid_f.reshape(M, 1)

    if M <= row_tile:
        tm = M                                   # single block == full array
        grid_m = 1
    else:
        tm = row_tile                            # multiple of 8 sublanes
        m_pad = _round_up(M, tm)
        if m_pad != M:
            pad = m_pad - M                      # zero rows / zero mask => no-op
            mp = jnp.pad(mp, ((0, pad), (0, 0)))
            pp = jnp.pad(pp, ((0, pad), (0, 0)))
            mt = jnp.pad(mt, ((0, pad), (0, 0)))
            mk = jnp.pad(mk, ((0, pad), (0, 0)))
        grid_m = m_pad // tm

    outs = pl.pallas_call(
        _mel_l1_sums_kernel,
        grid=(grid_m,),
        in_specs=[
            pl.BlockSpec((tm, C), lambda i: (i, 0)),
            pl.BlockSpec((tm, C), lambda i: (i, 0)),
            pl.BlockSpec((tm, C), lambda i: (i, 0)),
            pl.BlockSpec((tm, 1), lambda i: (i, 0)),
        ],
        out_specs=[pl.BlockSpec((1, 1), lambda i: (0, 0)) for _ in range(3)],
        out_shape=[jax.ShapeDtypeStruct((1, 1), jnp.float32)] * 3,
        compiler_params=pltpu.CompilerParams(
            dimension_semantics=("arbitrary",)),   # accumulator across the grid
    )(mp, pp, mt, mk)
    return outs[0][0, 0], outs[1][0, 0], outs[2][0, 0]


# ----------------------------------------------------------------------------
# fused masked-MSE partial sums for pitch / energy / duration streams sharing
# one mask.  log(target + 1) transform (for duration) is done in-kernel.
# ----------------------------------------------------------------------------
def _masked_mse_sums_kernel(*refs, n_pairs, log1p):
    num_in = 2 * n_pairs + 1
    in_refs = refs[:num_in]
    out_refs = refs[num_in:]

    mask = in_refs[2 * n_pairs][...]     # (B, L) f32, 1.0 == valid
    valid = mask > 0.5

    for i in range(n_pairs):
        p = in_refs[2 * i][...].astype(jnp.float32)
        t = in_refs[2 * i + 1][...].astype(jnp.float32)
        if log1p[i]:
            t = jnp.log(t + 1.0)         # log_duration_targets = log(dur + 1)
        d = jnp.where(valid, p - t, 0.0)
        out_refs[i][...] = _sum_all(d * d)
    out_refs[n_pairs][...] = _sum_all(mask)   # valid element count


def masked_mse_sums(pairs, mask_valid_f):
    """pairs: list of (pred, tgt, apply_log1p_to_target).  All share one mask.

    Returns ([sum((pred-tgt)^2 over valid) per pair], valid_count).
    Whole arrays fit VMEM even at production FastSpeech2 sizes, so a single
    un-gridded block is used (one kernel launch for the whole group).
    """
    n = len(pairs)
    flat_inputs = []
    log1p = []
    for p, t, flag in pairs:
        assert p.shape == mask_valid_f.shape and t.shape == mask_valid_f.shape
        flat_inputs += [p, t]
        log1p.append(bool(flag))
    flat_inputs.append(mask_valid_f)

    kern = functools.partial(_masked_mse_sums_kernel,
                             n_pairs=n, log1p=tuple(log1p))
    outs = pl.pallas_call(
        kern,
        out_shape=[jax.ShapeDtypeStruct((1, 1), jnp.float32)] * (n + 1),
    )(*flat_inputs)
    sq_sums = [o[0, 0] for o in outs[:n]]
    count = outs[n][0, 0]
    return sq_sums, count


# ----------------------------------------------------------------------------
# FastSpeech2Loss forward
# ----------------------------------------------------------------------------
def fastspeech2_loss(
    mel_targets, pitch_targets, energy_targets, duration_targets,
    mel_predictions, postnet_mel_predictions, pitch_predictions,
    energy_predictions, log_duration_predictions, src_masks, mel_masks,
    pitch_feature_level="phoneme_level", energy_feature_level="phoneme_level",
):
    # torch: src_masks = ~src_masks ; mel_masks = ~mel_masks   (True == valid)
    src_valid = jnp.logical_not(src_masks)
    mel_valid = jnp.logical_not(mel_masks)

    # torch: mel_targets = mel_targets[:, :mel_masks.shape[1], :]
    t_mel = mel_valid.shape[1]
    mel_targets = mel_targets[:, :t_mel, :]
    n_mels = mel_targets.shape[-1]

    mel_valid_f = mel_valid.astype(jnp.float32)
    src_valid_f = src_valid.astype(jnp.float32)

    # ---- mel + postnet-mel L1 losses (single fused pass) -------------------
    mel_sum, post_sum, frame_cnt = mel_l1_sums(
        mel_predictions, postnet_mel_predictions, mel_targets, mel_valid_f)
    denom = frame_cnt * jnp.float32(n_mels)      # masked_select count
    mel_loss = mel_sum / denom
    postnet_mel_loss = post_sum / denom

    # ---- pitch / energy / duration MSE losses, grouped by mask -------------
    groups = {"src": [], "mel": []}
    names = {"src": [], "mel": []}

    key_p = "src" if pitch_feature_level == "phoneme_level" else "mel"
    groups[key_p].append((pitch_predictions, pitch_targets, False))
    names[key_p].append("pitch")

    key_e = "src" if energy_feature_level == "phoneme_level" else "mel"
    groups[key_e].append((energy_predictions, energy_targets, False))
    names[key_e].append("energy")

    groups["src"].append((log_duration_predictions, duration_targets, True))
    names["src"].append("duration")

    losses = {}
    for key, mask_f in (("src", src_valid_f), ("mel", mel_valid_f)):
        if not groups[key]:
            continue
        sq_sums, cnt = masked_mse_sums(groups[key], mask_f)
        for nm, s in zip(names[key], sq_sums):
            losses[nm] = s / cnt

    pitch_loss = losses["pitch"]
    energy_loss = losses["energy"]
    duration_loss = losses["duration"]

    total_loss = (mel_loss + postnet_mel_loss + duration_loss
                  + pitch_loss + energy_loss)
    return (total_loss, mel_loss, postnet_mel_loss,
            pitch_loss, energy_loss, duration_loss)


# ----------------------------------------------------------------------------
# pure-JAX reference (faithful translation of the torch module)
# ----------------------------------------------------------------------------
def reference_loss(
    mel_targets, pitch_targets, energy_targets, duration_targets,
    mel_predictions, postnet_mel_predictions, pitch_predictions,
    energy_predictions, log_duration_predictions, src_masks, mel_masks,
    pitch_feature_level="phoneme_level", energy_feature_level="phoneme_level",
):
    src_valid = jnp.logical_not(src_masks)
    mel_valid = jnp.logical_not(mel_masks)
    log_dur_tgt = jnp.log(duration_targets.astype(jnp.float32) + 1.0)
    mel_targets = mel_targets[:, :mel_valid.shape[1], :]

    def masked_mean(x, mask):            # == masked_select(...).mean()
        m = jnp.broadcast_to(mask, x.shape)
        return jnp.sum(jnp.where(m, x, 0.0)) / jnp.sum(m.astype(jnp.float32))

    mel_loss = masked_mean(jnp.abs(mel_predictions - mel_targets),
                           mel_valid[..., None])
    postnet_mel_loss = masked_mean(jnp.abs(postnet_mel_predictions - mel_targets),
                                   mel_valid[..., None])

    p_mask = src_valid if pitch_feature_level == "phoneme_level" else mel_valid
    e_mask = src_valid if energy_feature_level == "phoneme_level" else mel_valid
    pitch_loss = masked_mean((pitch_predictions - pitch_targets) ** 2, p_mask)
    energy_loss = masked_mean((energy_predictions - energy_targets) ** 2, e_mask)
    duration_loss = masked_mean((log_duration_predictions - log_dur_tgt) ** 2,
                                src_valid)

    total = (mel_loss + postnet_mel_loss + duration_loss
             + pitch_loss + energy_loss)
    return (total, mel_loss, postnet_mel_loss,
            pitch_loss, energy_loss, duration_loss)


# ----------------------------------------------------------------------------
# main
# ----------------------------------------------------------------------------
if __name__ == "__main__":
    B, L_src, T_mel, n_mels = 2, 8, 16, 32

    key = jax.random.PRNGKey(0)
    ks = jax.random.split(key, 9)

    src_lens = jnp.array([L_src, L_src - 3], jnp.int32)
    mel_lens = jnp.array([T_mel, T_mel - 5], jnp.int32)
    src_masks = jnp.arange(L_src)[None, :] >= src_lens[:, None]   # True == pad
    mel_masks = jnp.arange(T_mel)[None, :] >= mel_lens[:, None]   # True == pad

    mel_targets = jax.random.normal(ks[0], (B, T_mel, n_mels), jnp.float32)
    mel_predictions = jax.random.normal(ks[1], (B, T_mel, n_mels), jnp.float32)
    postnet_mel_predictions = jax.random.normal(ks[2], (B, T_mel, n_mels),
                                                jnp.float32)
    pitch_targets = jax.random.normal(ks[3], (B, L_src), jnp.float32)
    pitch_predictions = jax.random.normal(ks[4], (B, L_src), jnp.float32)
    energy_targets = jax.random.normal(ks[5], (B, L_src), jnp.float32)
    energy_predictions = jax.random.normal(ks[6], (B, L_src), jnp.float32)
    duration_targets = jnp.round(
        jax.random.uniform(ks[7], (B, L_src), jnp.float32) * 5.0)
    log_duration_predictions = jax.random.normal(ks[8], (B, L_src), jnp.float32)

    args = (mel_targets, pitch_targets, energy_targets, duration_targets,
            mel_predictions, postnet_mel_predictions, pitch_predictions,
            energy_predictions, log_duration_predictions, src_masks, mel_masks)

    loss_fn = jax.jit(functools.partial(
        fastspeech2_loss,
        pitch_feature_level="phoneme_level",
        energy_feature_level="phoneme_level"))

    out = loss_fn(*args)
    out = jax.block_until_ready(out)

    ref = reference_loss(*args,
                         pitch_feature_level="phoneme_level",
                         energy_feature_level="phoneme_level")

    names = ("total", "mel", "postnet_mel", "pitch", "energy", "duration")
    for nm, a, b in zip(names, out, ref):
        assert jnp.allclose(a, b, atol=1e-5, rtol=1e-5), (nm, a, b)

    print("KERNEL_OK")
</pallas_src>

<mosaic_0001>
module attributes {stable_mosaic.version = 11 : i64} {
  func.func @_mel_l1_sums_kernel(%arg0: i32, %arg1: memref<32x32xf32, #tpu.memory_space<vmem>>, %arg2: memref<32x32xf32, #tpu.memory_space<vmem>>, %arg3: memref<32x32xf32, #tpu.memory_space<vmem>>, %arg4: memref<32x1xf32, #tpu.memory_space<vmem>>, %arg5: memref<1x1xf32, #tpu.memory_space<vmem>>, %arg6: memref<1x1xf32, #tpu.memory_space<vmem>>, %arg7: memref<1x1xf32, #tpu.memory_space<vmem>>) attributes {dimension_semantics = [#tpu.dimension_semantics<arbitrary>], iteration_bounds = array<i64: 1>, scalar_prefetch = 0 : i64, scratch_operands = 0 : i64, tpu.core_type = #tpu.core_type<tc>, window_params = [{transform_indices = @transform_0, window_bounds = array<i64: 32, 32>}, {transform_indices = @transform_1, window_bounds = array<i64: 32, 32>}, {transform_indices = @transform_2, window_bounds = array<i64: 32, 32>}, {transform_indices = @transform_3, window_bounds = array<i64: 32, 1>}, {pipeline_mode = #tpu.pipeline_mode<synchronous>, transform_indices = @transform_4, window_bounds = array<i64: 1, 1>}, {pipeline_mode = #tpu.pipeline_mode<synchronous>, transform_indices = @transform_5, window_bounds = array<i64: 1, 1>}, {pipeline_mode = #tpu.pipeline_mode<synchronous>, transform_indices = @transform_6, window_bounds = array<i64: 1, 1>}]} {
    %c0_i32 = arith.constant 0 : i32
    %0 = arith.cmpi eq, %arg0, %c0_i32 : i32
    %1 = arith.extui %0 : i1 to i32
    %c0_i32_0 = arith.constant 0 : i32
    %2 = arith.cmpi ne, %1, %c0_i32_0 : i32
    scf.if %2 {
      %cst_28 = arith.constant 0.000000e+00 : f32
      %42 = vector.broadcast %cst_28 : f32 to vector<1x1xf32>
      %c0_29 = arith.constant 0 : index
      %c0_30 = arith.constant 0 : index
      %43 = vector.load %arg5[%c0_29, %c0_30] : memref<1x1xf32, #tpu.memory_space<vmem>>, vector<1x1xf32>
      tpu.vector_store %arg5[%c0_29, %c0_30], %42 {strides = array<i32>} : memref<1x1xf32, #tpu.memory_space<vmem>>, vector<1x1xf32>,
      %cst_31 = arith.constant 0.000000e+00 : f32
      %44 = vector.broadcast %cst_31 : f32 to vector<1x1xf32>
      %c0_32 = arith.constant 0 : index
      %c0_33 = arith.constant 0 : index
      %45 = vector.load %arg6[%c0_32, %c0_33] : memref<1x1xf32, #tpu.memory_space<vmem>>, vector<1x1xf32>
      tpu.vector_store %arg6[%c0_32, %c0_33], %44 {strides = array<i32>} : memref<1x1xf32, #tpu.memory_space<vmem>>, vector<1x1xf32>,
      %cst_34 = arith.constant 0.000000e+00 : f32
      %46 = vector.broadcast %cst_34 : f32 to vector<1x1xf32>
      %c0_35 = arith.constant 0 : index
      %c0_36 = arith.constant 0 : index
      %47 = vector.load %arg7[%c0_35, %c0_36] : memref<1x1xf32, #tpu.memory_space<vmem>>, vector<1x1xf32>
      tpu.vector_store %arg7[%c0_35, %c0_36], %46 {strides = array<i32>} : memref<1x1xf32, #tpu.memory_space<vmem>>, vector<1x1xf32>,
    } else {
    }
    %c0 = arith.constant 0 : index
    %c0_1 = arith.constant 0 : index
    %3 = vector.load %arg4[%c0, %c0_1] : memref<32x1xf32, #tpu.memory_space<vmem>>, vector<32x1xf32>
    %cst = arith.constant 5.000000e-01 : f32
    %4 = vector.broadcast %cst : f32 to vector<32x1xf32>
    %5 = arith.cmpf ogt, %3, %4 : vector<32x1xf32>
    %c0_2 = arith.constant 0 : index
    %c0_3 = arith.constant 0 : index
    %6 = vector.load %arg3[%c0_2, %c0_3] : memref<32x32xf32, #tpu.memory_space<vmem>>, vector<32x32xf32>
    %c0_4 = arith.constant 0 : index
    %c0_5 = arith.constant 0 : index
    %7 = vector.load %arg1[%c0_4, %c0_5] : memref<32x32xf32, #tpu.memory_space<vmem>>, vector<32x32xf32>
    %8 = arith.subf %7, %6 : vector<32x32xf32>
    %9 = math.absf %8 : vector<32x32xf32>
    %cst_6 = arith.constant 0.000000e+00 : f32
    %10 = vector.shape_cast %5 : vector<32x1xi1> to vector<32x1xi1>
    %11 = vector.broadcast %10 : vector<32x1xi1> to vector<32x32xi1>
    %12 = vector.broadcast %cst_6 : f32 to vector<32x32xf32>
    %13 = arith.select %11, %9, %12 : vector<32x32xi1>, vector<32x32xf32>
    %c0_7 = arith.constant 0 : index
    %c0_8 = arith.constant 0 : index
    %14 = vector.load %arg2[%c0_7, %c0_8] : memref<32x32xf32, #tpu.memory_space<vmem>>, vector<32x32xf32>
    %15 = arith.subf %14, %6 : vector<32x32xf32>
    %16 = math.absf %15 : vector<32x32xf32>
    %cst_9 = arith.constant 0.000000e+00 : f32
    %17 = vector.shape_cast %5 : vector<32x1xi1> to vector<32x1xi1>
    %18 = vector.broadcast %17 : vector<32x1xi1> to vector<32x32xi1>
    %19 = vector.broadcast %cst_9 : f32 to vector<32x32xf32>
    %20 = arith.select %18, %16, %19 : vector<32x32xi1>, vector<32x32xf32>
    %c0_10 = arith.constant 0 : index
    %c0_11 = arith.constant 0 : index
    %21 = vector.load %arg5[%c0_10, %c0_11] : memref<1x1xf32, #tpu.memory_space<vmem>>, vector<1x1xf32>
    %cst_12 = arith.constant dense<0.000000e+00> : vector<32xf32>
    %22 = vector.multi_reduction <add>, %13, %cst_12 [1] : vector<32x32xf32> to vector<32xf32>
    %23 = vector.shape_cast %22 : vector<32xf32> to vector<32x1xf32>
    %cst_13 = arith.constant dense<0.000000e+00> : vector<1xf32>
    %24 = vector.multi_reduction <add>, %23, %cst_13 [0] : vector<32x1xf32> to vector<1xf32>
    %25 = vector.shape_cast %24 : vector<1xf32> to vector<1x1xf32>
    %26 = arith.addf %21, %25 : vector<1x1xf32>
    %c0_14 = arith.constant 0 : index
    %c0_15 = arith.constant 0 : index
    %27 = vector.load %arg5[%c0_14, %c0_15] : memref<1x1xf32, #tpu.memory_space<vmem>>, vector<1x1xf32>
    tpu.vector_store %arg5[%c0_14, %c0_15], %26 {strides = array<i32>} : memref<1x1xf32, #tpu.memory_space<vmem>>, vector<1x1xf32>,
    %c0_16 = arith.constant 0 : index
    %c0_17 = arith.constant 0 : index
    %28 = vector.load %arg6[%c0_16, %c0_17] : memref<1x1xf32, #tpu.memory_space<vmem>>, vector<1x1xf32>
    %cst_18 = arith.constant dense<0.000000e+00> : vector<32xf32>
    %29 = vector.multi_reduction <add>, %20, %cst_18 [1] : vector<32x32xf32> to vector<32xf32>
    %30 = vector.shape_cast %29 : vector<32xf32> to vector<32x1xf32>
    %cst_19 = arith.constant dense<0.000000e+00> : vector<1xf32>
    %31 = vector.multi_reduction <add>, %30, %cst_19 [0] : vector<32x1xf32> to vector<1xf32>
    %32 = vector.shape_cast %31 : vector<1xf32> to vector<1x1xf32>
    %33 = arith.addf %28, %32 : vector<1x1xf32>
    %c0_20 = arith.constant 0 : index
    %c0_21 = arith.constant 0 : index
    %34 = vector.load %arg6[%c0_20, %c0_21] : memref<1x1xf32, #tpu.memory_space<vmem>>, vector<1x1xf32>
    tpu.vector_store %arg6[%c0_20, %c0_21], %33 {strides = array<i32>} : memref<1x1xf32, #tpu.memory_space<vmem>>, vector<1x1xf32>,
    %c0_22 = arith.constant 0 : index
    %c0_23 = arith.constant 0 : index
    %35 = vector.load %arg7[%c0_22, %c0_23] : memref<1x1xf32, #tpu.memory_space<vmem>>, vector<1x1xf32>
    %cst_24 = arith.constant dense<0.000000e+00> : vector<32xf32>
    %36 = vector.multi_reduction <add>, %3, %cst_24 [1] : vector<32x1xf32> to vector<32xf32>
    %37 = vector.shape_cast %36 : vector<32xf32> to vector<32x1xf32>
    %cst_25 = arith.constant dense<0.000000e+00> : vector<1xf32>
    %38 = vector.multi_reduction <add>, %37, %cst_25 [0] : vector<32x1xf32> to vector<1xf32>
    %39 = vector.shape_cast %38 : vector<1xf32> to vector<1x1xf32>
    %40 = arith.addf %35, %39 : vector<1x1xf32>
    %c0_26 = arith.constant 0 : index
    %c0_27 = arith.constant 0 : index
    %41 = vector.load %arg7[%c0_26, %c0_27] : memref<1x1xf32, #tpu.memory_space<vmem>>, vector<1x1xf32>
    tpu.vector_store %arg7[%c0_26, %c0_27], %40 {strides = array<i32>} : memref<1x1xf32, #tpu.memory_space<vmem>>, vector<1x1xf32>,
    return
  }
  func.func @transform_0(%arg0: i32) -> (i32, i32) {
    %c0_i32 = arith.constant 0 : i32
    %c0_i32_0 = arith.constant 0 : i32
    return %arg0, %c0_i32 : i32, i32
  }
  func.func @transform_1(%arg0: i32) -> (i32, i32) {
    %c0_i32 = arith.constant 0 : i32
    %c0_i32_0 = arith.constant 0 : i32
    return %arg0, %c0_i32 : i32, i32
  }
  func.func @transform_2(%arg0: i32) -> (i32, i32) {
    %c0_i32 = arith.constant 0 : i32
    %c0_i32_0 = arith.constant 0 : i32
    return %arg0, %c0_i32 : i32, i32
  }
  func.func @transform_3(%arg0: i32) -> (i32, i32) {
    %c0_i32 = arith.constant 0 : i32
    %c0_i32_0 = arith.constant 0 : i32
    return %arg0, %c0_i32 : i32, i32
  }
  func.func @transform_4(%arg0: i32) -> (i32, i32) {
    %c0_i32 = arith.constant 0 : i32
    %c0_i32_0 = arith.constant 0 : i32
    %c0_i32_1 = arith.constant 0 : i32
    return %c0_i32, %c0_i32_0 : i32, i32
  }
  func.func @transform_5(%arg0: i32) -> (i32, i32) {
    %c0_i32 = arith.constant 0 : i32
    %c0_i32_0 = arith.constant 0 : i32
    %c0_i32_1 = arith.constant 0 : i32
    return %c0_i32, %c0_i32_0 : i32, i32
  }
  func.func @transform_6(%arg0: i32) -> (i32, i32) {
    %c0_i32 = arith.constant 0 : i32
    %c0_i32_0 = arith.constant 0 : i32
    %c0_i32_1 = arith.constant 0 : i32
    return %c0_i32, %c0_i32_0 : i32, i32
  }
}

module attributes {stable_mosaic.version = 11 : i64} {
  func.func @_masked_mse_sums_kernel(%arg0: memref<2x8xf32, #tpu.memory_space<vmem>>, %arg1: memref<2x8xf32, #tpu.memory_space<vmem>>, %arg2: memref<2x8xf32, #tpu.memory_space<vmem>>, %arg3: memref<2x8xf32, #tpu.memory_space<vmem>>, %arg4: memref<2x8xf32, #tpu.memory_space<vmem>>, %arg5: memref<2x8xf32, #tpu.memory_space<vmem>>, %arg6: memref<2x8xf32, #tpu.memory_space<vmem>>, %arg7: memref<1x1xf32, #tpu.memory_space<vmem>>, %arg8: memref<1x1xf32, #tpu.memory_space<vmem>>, %arg9: memref<1x1xf32, #tpu.memory_space<vmem>>, %arg10: memref<1x1xf32, #tpu.memory_space<vmem>>) attributes {dimension_semantics = [], scalar_prefetch = 0 : i64, scratch_operands = 0 : i64, tpu.core_type = #tpu.core_type<tc>} {
    %c0 = arith.constant 0 : index
    %c0_0 = arith.constant 0 : index
    %0 = vector.load %arg6[%c0, %c0_0] : memref<2x8xf32, #tpu.memory_space<vmem>>, vector<2x8xf32>
    %cst = arith.constant 5.000000e-01 : f32
    %1 = vector.broadcast %cst : f32 to vector<2x8xf32>
    %2 = arith.cmpf ogt, %0, %1 : vector<2x8xf32>
    %c0_1 = arith.constant 0 : index
    %c0_2 = arith.constant 0 : index
    %3 = vector.load %arg0[%c0_1, %c0_2] : memref<2x8xf32, #tpu.memory_space<vmem>>, vector<2x8xf32>
    %c0_3 = arith.constant 0 : index
    %c0_4 = arith.constant 0 : index
    %4 = vector.load %arg1[%c0_3, %c0_4] : memref<2x8xf32, #tpu.memory_space<vmem>>, vector<2x8xf32>
    %5 = arith.subf %3, %4 : vector<2x8xf32>
    %cst_5 = arith.constant 0.000000e+00 : f32
    %6 = vector.broadcast %cst_5 : f32 to vector<2x8xf32>
    %7 = arith.select %2, %5, %6 : vector<2x8xi1>, vector<2x8xf32>
    %8 = arith.mulf %7, %7 : vector<2x8xf32>
    %cst_6 = arith.constant dense<0.000000e+00> : vector<2xf32>
    %9 = vector.multi_reduction <add>, %8, %cst_6 [1] : vector<2x8xf32> to vector<2xf32>
    %10 = vector.shape_cast %9 : vector<2xf32> to vector<2x1xf32>
    %cst_7 = arith.constant dense<0.000000e+00> : vector<1xf32>
    %11 = vector.multi_reduction <add>, %10, %cst_7 [0] : vector<2x1xf32> to vector<1xf32>
    %12 = vector.shape_cast %11 : vector<1xf32> to vector<1x1xf32>
    %c0_8 = arith.constant 0 : index
    %c0_9 = arith.constant 0 : index
    %13 = vector.load %arg7[%c0_8, %c0_9] : memref<1x1xf32, #tpu.memory_space<vmem>>, vector<1x1xf32>
    tpu.vector_store %arg7[%c0_8, %c0_9], %12 {strides = array<i32>} : memref<1x1xf32, #tpu.memory_space<vmem>>, vector<1x1xf32>,
    %c0_10 = arith.constant 0 : index
    %c0_11 = arith.constant 0 : index
    %14 = vector.load %arg2[%c0_10, %c0_11] : memref<2x8xf32, #tpu.memory_space<vmem>>, vector<2x8xf32>
    %c0_12 = arith.constant 0 : index
    %c0_13 = arith.constant 0 : index
    %15 = vector.load %arg3[%c0_12, %c0_13] : memref<2x8xf32, #tpu.memory_space<vmem>>, vector<2x8xf32>
    %16 = arith.subf %14, %15 : vector<2x8xf32>
    %cst_14 = arith.constant 0.000000e+00 : f32
    %17 = vector.broadcast %cst_14 : f32 to vector<2x8xf32>
    %18 = arith.select %2, %16, %17 : vector<2x8xi1>, vector<2x8xf32>
    %19 = arith.mulf %18, %18 : vector<2x8xf32>
    %cst_15 = arith.constant dense<0.000000e+00> : vector<2xf32>
    %20 = vector.multi_reduction <add>, %19, %cst_15 [1] : vector<2x8xf32> to vector<2xf32>
    %21 = vector.shape_cast %20 : vector<2xf32> to vector<2x1xf32>
    %cst_16 = arith.constant dense<0.000000e+00> : vector<1xf32>
    %22 = vector.multi_reduction <add>, %21, %cst_16 [0] : vector<2x1xf32> to vector<1xf32>
    %23 = vector.shape_cast %22 : vector<1xf32> to vector<1x1xf32>
    %c0_17 = arith.constant 0 : index
    %c0_18 = arith.constant 0 : index
    %24 = vector.load %arg8[%c0_17, %c0_18] : memref<1x1xf32, #tpu.memory_space<vmem>>, vector<1x1xf32>
    tpu.vector_store %arg8[%c0_17, %c0_18], %23 {strides = array<i32>} : memref<1x1xf32, #tpu.memory_space<vmem>>, vector<1x1xf32>,
    %c0_19 = arith.constant 0 : index
    %c0_20 = arith.constant 0 : index
    %25 = vector.load %arg4[%c0_19, %c0_20] : memref<2x8xf32, #tpu.memory_space<vmem>>, vector<2x8xf32>
    %c0_21 = arith.constant 0 : index
    %c0_22 = arith.constant 0 : index
    %26 = vector.load %arg5[%c0_21, %c0_22] : memref<2x8xf32, #tpu.memory_space<vmem>>, vector<2x8xf32>
    %cst_23 = arith.constant 1.000000e+00 : f32
    %27 = vector.broadcast %cst_23 : f32 to vector<2x8xf32>
    %28 = arith.addf %26, %27 : vector<2x8xf32>
    %29 = math.log %28 : vector<2x8xf32>
    %30 = arith.subf %25, %29 : vector<2x8xf32>
    %cst_24 = arith.constant 0.000000e+00 : f32
    %31 = vector.broadcast %cst_24 : f32 to vector<2x8xf32>
    %32 = arith.select %2, %30, %31 : vector<2x8xi1>, vector<2x8xf32>
    %33 = arith.mulf %32, %32 : vector<2x8xf32>
    %cst_25 = arith.constant dense<0.000000e+00> : vector<2xf32>
    %34 = vector.multi_reduction <add>, %33, %cst_25 [1] : vector<2x8xf32> to vector<2xf32>
    %35 = vector.shape_cast %34 : vector<2xf32> to vector<2x1xf32>
    %cst_26 = arith.constant dense<0.000000e+00> : vector<1xf32>
    %36 = vector.multi_reduction <add>, %35, %cst_26 [0] : vector<2x1xf32> to vector<1xf32>
    %37 = vector.shape_cast %36 : vector<1xf32> to vector<1x1xf32>
    %c0_27 = arith.constant 0 : index
    %c0_28 = arith.constant 0 : index
    %38 = vector.load %arg9[%c0_27, %c0_28] : memref<1x1xf32, #tpu.memory_space<vmem>>, vector<1x1xf32>
    tpu.vector_store %arg9[%c0_27, %c0_28], %37 {strides = array<i32>} : memref<1x1xf32, #tpu.memory_space<vmem>>, vector<1x1xf32>,
    %cst_29 = arith.constant dense<0.000000e+00> : vector<2xf32>
    %39 = vector.multi_reduction <add>, %0, %cst_29 [1] : vector<2x8xf32> to vector<2xf32>
    %40 = vector.shape_cast %39 : vector<2xf32> to vector<2x1xf32>
    %cst_30 = arith.constant dense<0.000000e+00> : vector<1xf32>
    %41 = vector.multi_reduction <add>, %40, %cst_30 [0] : vector<2x1xf32> to vector<1xf32>
    %42 = vector.shape_cast %41 : vector<1xf32> to vector<1x1xf32>
    %c0_31 = arith.constant 0 : index
    %c0_32 = arith.constant 0 : index
    %43 = vector.load %arg10[%c0_31, %c0_32] : memref<1x1xf32, #tpu.memory_space<vmem>>, vector<1x1xf32>
    tpu.vector_store %arg10[%c0_31, %c0_32], %42 {strides = array<i32>} : memref<1x1xf32, #tpu.memory_space<vmem>>, vector<1x1xf32>,
    return
  }
}

</mosaic_0001>

<llo_original>
// kernel: fastspeech2_loss.3
$region0: #{fastspeech2_loss.3}
  #allocation0 [shape = 'u32[]', space=smem, size = 0x4, offset = 0x4, fixed_abs, tag = 'smem constant byte address 0x4 - core index']
  #allocation1 [shape = 'u32[144,128]{1,0:T(1,128)}', space=vmem, size = 0x12000, scoped, tag = 'internal scratch']
  %s0 = inlined_call_operand.vmem [shape: f32[2,8], index: 0, kind: input, shape index: {}]
  %s1 = inlined_call_operand.vmem [shape: f32[2,8], index: 1, kind: input, shape index: {}]
  %s2 = inlined_call_operand.vmem [shape: f32[2,8], index: 2, kind: input, shape index: {}]
  %s3 = inlined_call_operand.vmem [shape: f32[2,8], index: 3, kind: input, shape index: {}]
  %s4 = inlined_call_operand.vmem [shape: f32[2,8], index: 4, kind: input, shape index: {}]
  %s5 = inlined_call_operand.vmem [shape: f32[2,8], index: 5, kind: input, shape index: {}]
  %s6 = inlined_call_operand.vmem [shape: f32[2,8], index: 6, kind: input, shape index: {}]
  %s7 = inlined_call_operand.hbm [shape: f32[1,1], index: 7, kind: output, shape index: {0}]
  %s8 = inlined_call_operand.hbm [shape: f32[1,1], index: 8, kind: output, shape index: {1}]
  %s9 = inlined_call_operand.hbm [shape: f32[1,1], index: 9, kind: output, shape index: {2}]
  %s10 = inlined_call_operand.hbm [shape: f32[1,1], index: 10, kind: output, shape index: {3}]
  %11 = xla_tuple %s7, %s8, %s9, %s10
  %s12 = sld [smem:[#allocation0]]
  $region62: #{fastspeech2_loss.3} parent=0
    _
  %s14 = ssub.s32 1, %s12
  %s15 = scalar_select 0, %s14, %s12
  $region1: #{fastspeech2_loss.3} parent=0
    #allocation2 [shape = 'u8[512]{0}', space=vmem, size = 0x400, scoped, tag = 'output window, operand 0, single buffered']
    #allocation3 [shape = 's32[1]{0}', space=sflag, size = 0x4, scoped, tag = 'scoped memory for fastspeech2_loss.3']
    #allocation4 [shape = 'u8[512]{0}', space=vmem, size = 0x400, scoped, tag = 'output window, operand 1, single buffered']
    #allocation5 [shape = 's32[1]{0}', space=sflag, size = 0x4, scoped, tag = 'scoped memory for fastspeech2_loss.3']
    #allocation6 [shape = 'u8[512]{0}', space=vmem, size = 0x400, scoped, tag = 'output window, operand 2, single buffered']
    #allocation7 [shape = 'u8[512]{0}', space=vmem, size = 0x400, scoped, tag = 'output window, operand 3, single buffered']
    #allocation8 [shape = 's32[1]{0}', space=sflag, size = 0x4, scoped, tag = 'scoped memory for fastspeech2_loss.3']
    %16 = vsyncpa [#allocation3], 0
    %17 = vsyncpa [#allocation5], 0
    %18 = vsyncpa [#allocation8], 0
    // Predicated region
    $region2: #{fastspeech2_loss.3} parent=1 // pred_check
      _
    $region3: #{fastspeech2_loss.3} parent=1 // pred_check_branch
      %20 = sbr.rel (0) target = $region5
    $region4: #{fastspeech2_loss.3} parent=1 // pred_region
      _
    $region5: #{fastspeech2_loss.3} parent=1 // pred_fallthru
      _
    // Predicated region
    $region6: #{fastspeech2_loss.3} parent=1 // pred_check
      _
    $region7: #{fastspeech2_loss.3} parent=1 // pred_check_branch
      %22 = sbr.rel (0) target = $region9
    $region8: #{fastspeech2_loss.3} parent=1 // pred_region
      _
    $region9: #{fastspeech2_loss.3} parent=1 // pred_fallthru
      _
    // Predicated region
    $region10: #{fastspeech2_loss.3} parent=1 // pred_check
      _
    $region11: #{fastspeech2_loss.3} parent=1 // pred_check_branch
      %24 = sbr.rel (0) target = $region13
    $region12: #{fastspeech2_loss.3} parent=1 // pred_region
      _
    $region13: #{fastspeech2_loss.3} parent=1 // pred_fallthru
      _
    // Predicated region
    $region14: #{fastspeech2_loss.3} parent=1 // pred_check
      _
    $region15: #{fastspeech2_loss.3} parent=1 // pred_check_branch
      %26 = sbr.rel (0) target = $region17
    $region16: #{fastspeech2_loss.3} parent=1 // pred_region
      _
    $region17: #{fastspeech2_loss.3} parent=1 // pred_fallthru
      _
    // Predicated region
    $region18: #{fastspeech2_loss.3} parent=1 // pred_check
      _
    $region19: #{fastspeech2_loss.3} parent=1 // pred_check_branch
      %28 = sbr.rel (0) target = $region21
    $region20: #{fastspeech2_loss.3} parent=1 // pred_region
      _
    $region21: #{fastspeech2_loss.3} parent=1 // pred_fallthru
      _
    // Predicated region
    $region22: #{fastspeech2_loss.3} parent=1 // pred_check
      _
    $region23: #{fastspeech2_loss.3} parent=1 // pred_check_branch
      %30 = sbr.rel (0) target = $region25
    $region24: #{fastspeech2_loss.3} parent=1 // pred_region
      _
    $region25: #{fastspeech2_loss.3} parent=1 // pred_fallthru
      _
    // Predicated region
    $region26: #{fastspeech2_loss.3} parent=1 // pred_check
      _
    $region27: #{fastspeech2_loss.3} parent=1 // pred_check_branch
      %32 = sbr.rel (0) target = $region29
    $region28: #{fastspeech2_loss.3} parent=1 // pred_region
      _
    $region29: #{fastspeech2_loss.3} parent=1 // pred_fallthru
      _
    %v33 = vld [vmem:[%s6] sm:$0x3]
    %vm34 = vcmp.gt.f32.partialorder %v33, 0.5
    %v35 = vld [vmem:[%s0] sm:$0x3]
    %v36 = vld [vmem:[%s1] sm:$0x3]
    %v37 = vsub.f32 %v35, %v36
    %v38 = vsel %vm34, %v37, 0.0
    %v39 = vmul.f32 %v38, %v38
    %vm40 = vcmask 58368
    %v41 = vsel %vm40, %v39, 0.0
    %42 = vadd.xlane.f32.xlu0 %v41
    %v43 = vpop.xlane.xlu0 %42
    %vm44 = vcmask 1041408
    %v45 = vsel %vm44, %v43, 0.0
    %v46 = vrot.slane %v45, 4
    %v47 = vadd.f32 %v45, %v46
    %v48 = vrot.slane %v47, 2
    %v49 = vadd.f32 %v47, %v48
    %v50 = vrot.slane %v49, 1
    %v51 = vadd.f32 %v49, %v50
    %vm52 = vcmask 0
    %53 = vst.msk [vmem:[#allocation2] sm:$0x1] %vm52, %v51
    %v54 = vld [vmem:[%s2] sm:$0x3]
    %v55 = vld [vmem:[%s3] sm:$0x3]
    %v56 = vsub.f32 %v54, %v55
    %v57 = vsel %vm34, %v56, 0.0
    %v58 = vmul.f32 %v57, %v57
    %v59 = vsel %vm40, %v58, 0.0
    %60 = vadd.xlane.f32.xlu0 %v59
    %v61 = vpop.xlane.xlu0 %60
    %v62 = vsel %vm44, %v61, 0.0
    %v63 = vrot.slane %v62, 4
    %v64 = vadd.f32 %v62, %v63
    %v65 = vrot.slane %v64, 2
    %v66 = vadd.f32 %v64, %v65
    %v67 = vrot.slane %v66, 1
    %v68 = vadd.f32 %v66, %v67
    %69 = vst.msk [vmem:[#allocation4] sm:$0x1] %vm52, %v68
    %v70 = vld [vmem:[%s4] sm:$0x3]
    %v71 = vld [vmem:[%s5] sm:$0x3]
    %v72 = vadd.f32 %v71, 1.0
    %v73 = vlog2.pop %v72
    %v74 = vmul.f32 %v73, 0.6931472
    %v75 = vsub.f32 %v70, %v74
    %v76 = vsel %vm34, %v75, 0.0
    %v77 = vmul.f32 %v76, %v76
    %v78 = vsel %vm40, %v77, 0.0
    %79 = vadd.xlane.f32.xlu0 %v78
    %v80 = vpop.xlane.xlu0 %79
    %v81 = vsel %vm44, %v80, 0.0
    %v82 = vrot.slane %v81, 4
    %v83 = vadd.f32 %v81, %v82
    %v84 = vrot.slane %v83, 2
    %v85 = vadd.f32 %v83, %v84
    %v86 = vrot.slane %v85, 1
    %v87 = vadd.f32 %v85, %v86
    %88 = vst.msk [vmem:[#allocation6] sm:$0x1] %vm52, %v87
    %v89 = vsel %vm40, %v33, 0.0
    %90 = vadd.xlane.f32.xlu0 %v89
    %v91 = vpop.xlane.xlu0 %90
    %v92 = vsel %vm44, %v91, 0.0
    %v93 = vrot.slane %v92, 4
    %v94 = vadd.f32 %v92, %v93
    %v95 = vrot.slane %v94, 2
    %v96 = vadd.f32 %v94, %v95
    %v97 = vrot.slane %v96, 1
    %v98 = vadd.f32 %v96, %v97
    %99 = vst.msk [vmem:[#allocation7] sm:$0x1] %vm52, %v98
    // Predicated region
    $region30: #{fastspeech2_loss.3} parent=1 // pred_check
      _
    $region31: #{fastspeech2_loss.3} parent=1 // pred_check_branch
      %101 = sbr.rel (0) target = $region33
    $region32: #{fastspeech2_loss.3} parent=1 // pred_region
      %s103 = ssub.s32 16, 16
      %104 = vsyncadd [#allocation3], %s103
      %s106 = sshll.u32 [#allocation2], 4
      %s107 = int_to_ptr.vmem [resolvable:$true] %s106
      %109 = dma.vmem_to_hbm [thread:$0]  %s107, 16, %s7, [#allocation3]
    $region33: #{fastspeech2_loss.3} parent=1 // pred_fallthru
      _
    // Predicated region
    $region34: #{fastspeech2_loss.3} parent=1 // pred_check
      _
    $region35: #{fastspeech2_loss.3} parent=1 // pred_check_branch
      %111 = sbr.rel (0) target = $region37
    $region36: #{fastspeech2_loss.3} parent=1 // pred_region
      %s113 = ssub.s32 16, 16
      %114 = vsyncadd [#allocation5], %s113
      %s116 = sshll.u32 [#allocation4], 4
      %s117 = int_to_ptr.vmem [resolvable:$true] %s116
      %119 = dma.vmem_to_hbm [thread:$0]  %s117, 16, %s8, [#allocation5]
    $region37: #{fastspeech2_loss.3} parent=1 // pred_fallthru
      _
    // Predicated region
    $region38: #{fastspeech2_loss.3} parent=1 // pred_check
      _
    $region39: #{fastspeech2_loss.3} parent=1 // pred_check_branch
      %121 = sbr.rel (0) target = $region41
    $region40: #{fastspeech2_loss.3} parent=1 // pred_region
      %s123 = ssub.s32 16, 16
      %124 = vsyncadd [#allocation5], %s123
      %s126 = sshll.u32 [#allocation6], 4
      %s127 = int_to_ptr.vmem [resolvable:$true] %s126
      %129 = dma.vmem_to_hbm [thread:$0]  %s127, 16, %s9, [#allocation5]
    $region41: #{fastspeech2_loss.3} parent=1 // pred_fallthru
      _
    // Predicated region
    $region42: #{fastspeech2_loss.3} parent=1 // pred_check
      _
    $region43: #{fastspeech2_loss.3} parent=1 // pred_check_branch
      %131 = sbr.rel (0) target = $region45
    $region44: #{fastspeech2_loss.3} parent=1 // pred_region
      %s133 = ssub.s32 16, 16
      %134 = vsyncadd [#allocation8], %s133
      %s136 = sshll.u32 [#allocation7], 4
      %s137 = int_to_ptr.vmem [resolvable:$true] %s136
      %139 = dma.vmem_to_hbm [thread:$0]  %s137, 16, %s10, [#allocation8]
    $region45: #{fastspeech2_loss.3} parent=1 // pred_fallthru
      _
    // Predicated region
    $region46: #{fastspeech2_loss.3} parent=1 // pred_check
      _
    $region47: #{fastspeech2_loss.3} parent=1 // pred_check_branch
      %141 = sbr.rel (0) target = $region49
    $region48: #{fastspeech2_loss.3} parent=1 // pred_region
      %142 = dma.done [#allocation3], 16
    $region49: #{fastspeech2_loss.3} parent=1 // pred_fallthru
      _
    // Predicated region
    $region50: #{fastspeech2_loss.3} parent=1 // pred_check
      _
    $region51: #{fastspeech2_loss.3} parent=1 // pred_check_branch
      %144 = sbr.rel (0) target = $region53
    $region52: #{fastspeech2_loss.3} parent=1 // pred_region
      %145 = dma.done [#allocation5], 16
    $region53: #{fastspeech2_loss.3} parent=1 // pred_fallthru
      _
    // Predicated region
    $region54: #{fastspeech2_loss.3} parent=1 // pred_check
      _
    $region55: #{fastspeech2_loss.3} parent=1 // pred_check_branch
      %147 = sbr.rel (0) target = $region57
    $region56: #{fastspeech2_loss.3} parent=1 // pred_region
      %148 = dma.done [#allocation5], 16
    $region57: #{fastspeech2_loss.3} parent=1 // pred_fallthru
      _
    // Predicated region
    $region58: #{fastspeech2_loss.3} parent=1 // pred_check
      _
    $region59: #{fastspeech2_loss.3} parent=1 // pred_check_branch
      %150 = sbr.rel (0) target = $region61
    $region60: #{fastspeech2_loss.3} parent=1 // pred_region
      %151 = dma.done [#allocation8], 16
    $region61: #{fastspeech2_loss.3} parent=1 // pred_fallthru
      _
    %152 = vsyncpa [#allocation3], 1
    %153 = vsyncpa [#allocation5], 1
    %154 = vsyncpa [#allocation8], 1

// kernel: fastspeech2_loss.2
$region0: #{fastspeech2_loss.2}
  #allocation0 [shape = 'u32[]', space=smem, size = 0x4, offset = 0x4, fixed_abs, tag = 'smem constant byte address 0x4 - core index']
  #allocation1 [shape = 'u32[144,128]{1,0:T(1,128)}', space=vmem, size = 0x12000, scoped, tag = 'internal scratch']
  %s0 = inlined_call_operand.vmem [shape: f32[32,32], index: 0, kind: input, shape index: {}]
  %s1 = inlined_call_operand.vmem [shape: f32[32,32], index: 1, kind: input, shape index: {}]
  %s2 = inlined_call_operand.hbm [shape: f32[32,32], index: 2, kind: input, shape index: {}]
  %s3 = inlined_call_operand.vmem [shape: f32[32,1], index: 3, kind: input, shape index: {}]
  %s4 = inlined_call_operand.hbm [shape: f32[1,1], index: 4, kind: output, shape index: {0}]
  %s5 = inlined_call_operand.hbm [shape: f32[1,1], index: 5, kind: output, shape index: {1}]
  %s6 = inlined_call_operand.hbm [shape: f32[1,1], index: 6, kind: output, shape index: {2}]
  %7 = xla_tuple %s4, %s5, %s6
  %s8 = sld [smem:[#allocation0]]
  $region50: #{fastspeech2_loss.2} parent=0
    _
  %s10 = ssub.s32 1, %s8
  %s11 = scalar_select 0, %s10, %s8
  $region1: #{fastspeech2_loss.2} parent=0
    #allocation2 [shape = 'u8[16384]{0}', space=vmem, size = 0x4000, scoped, tag = 'input window, operand 2, single buffered']
    #allocation3 [shape = 's32[1]{0}', space=sflag, size = 0x4, scoped, tag = 'scoped memory for fastspeech2_loss.2']
    #allocation4 [shape = 's32[1]{0}', space=sflag, size = 0x4, scoped, tag = 'scoped memory for fastspeech2_loss.2']
    #allocation5 [shape = 'u8[512]{0}', space=vmem, size = 0x400, scoped, tag = 'output window, operand 0, single buffered']
    #allocation6 [shape = 'u8[512]{0}', space=vmem, size = 0x400, scoped, tag = 'output window, operand 1, single buffered']
    #allocation7 [shape = 's32[1]{0}', space=sflag, size = 0x4, scoped, tag = 'scoped memory for fastspeech2_loss.2']
    #allocation8 [shape = 'u8[512]{0}', space=vmem, size = 0x400, scoped, tag = 'output window, operand 2, single buffered']
    %12 = vsyncpa [#allocation3], 0
    %13 = vsyncpa [#allocation4], 0
    %14 = vsyncpa [#allocation7], 0
    // Predicated region
    $region2: #{fastspeech2_loss.2} parent=1 // pred_check
      _
    $region3: #{fastspeech2_loss.2} parent=1 // pred_check_branch
      %16 = sbr.rel (0) target = $region5
    $region4: #{fastspeech2_loss.2} parent=1 // pred_region
      _
    $region5: #{fastspeech2_loss.2} parent=1 // pred_fallthru
      _
    // Predicated region
    $region6: #{fastspeech2_loss.2} parent=1 // pred_check
      _
    $region7: #{fastspeech2_loss.2} parent=1 // pred_check_branch
      %18 = sbr.rel (0) target = $region9
    $region8: #{fastspeech2_loss.2} parent=1 // pred_region
      _
    $region9: #{fastspeech2_loss.2} parent=1 // pred_fallthru
      _
    // Predicated region
    $region10: #{fastspeech2_loss.2} parent=1 // pred_check
      _
    $region11: #{fastspeech2_loss.2} parent=1 // pred_check_branch
      %20 = sbr.rel (0) target = $region13
    $region12: #{fastspeech2_loss.2} parent=1 // pred_region
      %s22 = ssub.s32 512, 512
      %23 = vsyncadd [#allocation3], %s22
      %s24 = sshll.u32 [#allocation2], 4
      %s25 = int_to_ptr.vmem [resolvable:$true] %s24
      %30 = dma.hbm_to_vmem [thread:$0]  %s2, 512, %s25, [#allocation3], 128, 128, 8
    $region13: #{fastspeech2_loss.2} parent=1 // pred_fallthru
      _
    // Predicated region
    $region14: #{fastspeech2_loss.2} parent=1 // pred_check
      _
    $region15: #{fastspeech2_loss.2} parent=1 // pred_check_branch
      %32 = sbr.rel (0) target = $region17
    $region16: #{fastspeech2_loss.2} parent=1 // pred_region
      _
    $region17: #{fastspeech2_loss.2} parent=1 // pred_fallthru
      _
    // Predicated region
    $region18: #{fastspeech2_loss.2} parent=1 // pred_check
      _
    $region19: #{fastspeech2_loss.2} parent=1 // pred_check_branch
      %34 = sbr.rel (0) target = $region21
    $region20: #{fastspeech2_loss.2} parent=1 // pred_region
      %35 = dma.done [#allocation3], 512
    $region21: #{fastspeech2_loss.2} parent=1 // pred_fallthru
      _
    %p36 = scmp.eq.s32.totalorder 0, 0
    // Predicated region
    $region22: #{fastspeech2_loss.2} parent=1 // pred_check
      %p37 = pneg %p36
    $region23: #{fastspeech2_loss.2} parent=1 // pred_check_branch
      %39 = sbr.rel (%p37) target = $region25
    $region24: #{fastspeech2_loss.2} parent=1 // pred_region
      %vm40 = vcmask 0
      %41 = vst.msk [vmem:[#allocation5] sm:$0x1] %vm40, 0.0
      %42 = vst.msk [vmem:[#allocation6] sm:$0x1] %vm40, 0.0
      %43 = vst.msk [vmem:[#allocation8] sm:$0x1] %vm40, 0.0
    $region25: #{fastspeech2_loss.2} parent=1 // pred_fallthru
      _
    %v44 = vld [vmem:[%s3] sm:$0xff]
    %v45 = vld [vmem:[%s3 + $0x8] sm:$0xff]
    %v46 = vld [vmem:[%s3 + $0x10] sm:$0xff]
    %v47 = vld [vmem:[%s3 + $0x18] sm:$0xff]
    %vm48 = vcmp.gt.f32.partialorder %v44, 0.5
    %vm49 = vcmp.gt.f32.partialorder %v45, 0.5
    %vm50 = vcmp.gt.f32.partialorder %v46, 0.5
    %vm51 = vcmp.gt.f32.partialorder %v47, 0.5
    %v52 = vld [vmem:[#allocation2] sm:$0xff]
    %v53 = vld [vmem:[#allocation2 + $0x8] sm:$0xff]
    %v54 = vld [vmem:[#allocation2 + $0x10] sm:$0xff]
    %v55 = vld [vmem:[#allocation2 + $0x18] sm:$0xff]
    %v56 = vld [vmem:[%s0] sm:$0xff]
    %v57 = vld [vmem:[%s0 + $0x8] sm:$0xff]
    %v58 = vld [vmem:[%s0 + $0x10] sm:$0xff]
    %v59 = vld [vmem:[%s0 + $0x18] sm:$0xff]
    %v60 = vsub.f32 %v56, %v52
    %v61 = vsub.f32 %v57, %v53
    %v62 = vsub.f32 %v58, %v54
    %v63 = vsub.f32 %v59, %v55
    %v64 = vand.u32 2147483647, %v60
    %v65 = vand.u32 2147483647, %v61
    %v66 = vand.u32 2147483647, %v62
    %v67 = vand.u32 2147483647, %v63
    %v68 = vsel %vm48, 1, 0
    %v69 = vsel %vm49, 1, 0
    %v70 = vsel %vm50, 1, 0
    %v71 = vsel %vm51, 1, 0
    %72 = vset.pattern.permute.xlu0 0
    %73 = vperm.xlu0 %72, %v68
    %v74 = vpop.permute.xlu0 %73
    %75 = vset.pattern.permute.xlu0 0
    %76 = vperm.xlu0 %75, %v69
    %v77 = vpop.permute.xlu0 %76
    %78 = vset.pattern.permute.xlu0 0
    %79 = vperm.xlu0 %78, %v70
    %v80 = vpop.permute.xlu0 %79
    %81 = vset.pattern.permute.xlu0 0
    %82 = vperm.xlu0 %81, %v71
    %v83 = vpop.permute.xlu0 %82
    %vm84 = vcmp.eq.s32.totalorder %v74, 1
    %vm85 = vcmp.eq.s32.totalorder %v77, 1
    %vm86 = vcmp.eq.s32.totalorder %v80, 1
    %vm87 = vcmp.eq.s32.totalorder %v83, 1
    %v88 = vsel %vm84, %v64, 0.0
    %v89 = vsel %vm85, %v65, 0.0
    %v90 = vsel %vm86, %v66, 0.0
    %v91 = vsel %vm87, %v67, 0.0
    %v92 = vld [vmem:[%s1] sm:$0xff]
    %v93 = vld [vmem:[%s1 + $0x8] sm:$0xff]
    %v94 = vld [vmem:[%s1 + $0x10] sm:$0xff]
    %v95 = vld [vmem:[%s1 + $0x18] sm:$0xff]
    %v96 = vsub.f32 %v92, %v52
    %v97 = vsub.f32 %v93, %v53
    %v98 = vsub.f32 %v94, %v54
    %v99 = vsub.f32 %v95, %v55
    %v100 = vand.u32 2147483647, %v96
    %v101 = vand.u32 2147483647, %v97
    %v102 = vand.u32 2147483647, %v98
    %v103 = vand.u32 2147483647, %v99
    %v104 = vsel %vm84, %v100, 0.0
    %v105 = vsel %vm85, %v101, 0.0
    %v106 = vsel %vm86, %v102, 0.0
    %v107 = vsel %vm87, %v103, 0.0
    %v108 = vld [vmem:[#allocation5] sm:$0x1]
    %vm109 = vcmask 261120
    %v110 = vsel %vm109, %v88, 0.0
    %111 = vadd.xlane.f32.xlu0 %v110
    %v112 = vpop.xlane.xlu0 %111
    %v113 = vsel %vm109, %v89, 0.0
    %114 = vadd.xlane.f32.xlu0 %v113
    %v115 = vpop.xlane.xlu0 %114
    %v116 = vsel %vm109, %v90, 0.0
    %117 = vadd.xlane.f32.xlu0 %v116
    %v118 = vpop.xlane.xlu0 %117
    %v119 = vsel %vm109, %v91, 0.0
    %120 = vadd.xlane.f32.xlu0 %v119
    %v121 = vpop.xlane.xlu0 %120
    %v122 = vadd.f32 %v112, %v115
    %v123 = vadd.f32 %v122, %v118
    %v124 = vadd.f32 %v123, %v121
    %v125 = vrot.slane %v124, 4
    %v126 = vadd.f32 %v124, %v125
    %v127 = vrot.slane %v126, 2
    %v128 = vadd.f32 %v126, %v127
    %v129 = vrot.slane %v128, 1
    %v130 = vadd.f32 %v128, %v129
    %v131 = vadd.f32 %v108, %v130
    %vm132 = vcmask 0
    %133 = vst.msk [vmem:[#allocation5] sm:$0x1] %vm132, %v131
    %v134 = vld [vmem:[#allocation6] sm:$0x1]
    %v135 = vsel %vm109, %v104, 0.0
    %136 = vadd.xlane.f32.xlu0 %v135
    %v137 = vpop.xlane.xlu0 %136
    %v138 = vsel %vm109, %v105, 0.0
    %139 = vadd.xlane.f32.xlu0 %v138
    %v140 = vpop.xlane.xlu0 %139
    %v141 = vsel %vm109, %v106, 0.0
    %142 = vadd.xlane.f32.xlu0 %v141
    %v143 = vpop.xlane.xlu0 %142
    %v144 = vsel %vm109, %v107, 0.0
    %145 = vadd.xlane.f32.xlu0 %v144
    %v146 = vpop.xlane.xlu0 %145
    %v147 = vadd.f32 %v137, %v140
    %v148 = vadd.f32 %v147, %v143
    %v149 = vadd.f32 %v148, %v146
    %v150 = vrot.slane %v149, 4
    %v151 = vadd.f32 %v149, %v150
    %v152 = vrot.slane %v151, 2
    %v153 = vadd.f32 %v151, %v152
    %v154 = vrot.slane %v153, 1
    %v155 = vadd.f32 %v153, %v154
    %v156 = vadd.f32 %v134, %v155
    %157 = vst.msk [vmem:[#allocation6] sm:$0x1] %vm132, %v156
    %v158 = vld [vmem:[#allocation8] sm:$0x1]
    %v159 = vadd.f32 %v44, 0.0
    %v160 = vadd.f32 %v45, 0.0
    %v161 = vadd.f32 %v46, 0.0
    %v162 = vadd.f32 %v47, 0.0
    %vm163 = vcmask 7168
    %v164 = vsel %vm163, %v159, 0.0
    %v165 = vsel %vm163, %v160, 0.0
    %v166 = vadd.f32 %v164, %v165
    %v167 = vsel %vm163, %v161, 0.0
    %v168 = vadd.f32 %v166, %v167
    %v169 = vsel %vm163, %v162, 0.0
    %v170 = vadd.f32 %v168, %v169
    %v171 = vrot.slane %v170, 4
    %v172 = vadd.f32 %v170, %v171
    %v173 = vrot.slane %v172, 2
    %v174 = vadd.f32 %v172, %v173
    %v175 = vrot.slane %v174, 1
    %v176 = vadd.f32 %v174, %v175
    %v177 = vadd.f32 %v158, %v176
    %178 = vst.msk [vmem:[#allocation8] sm:$0x1] %vm132, %v177
    // Predicated region
    $region26: #{fastspeech2_loss.2} parent=1 // pred_check
      _
    $region27: #{fastspeech2_loss.2} parent=1 // pred_check_branch
      %180 = sbr.rel (0) target = $region29
    $region28: #{fastspeech2_loss.2} parent=1 // pred_region
      %s182 = ssub.s32 16, 16
      %183 = vsyncadd [#allocation4], %s182
      %s185 = sshll.u32 [#allocation5], 4
      %s186 = int_to_ptr.vmem [resolvable:$true] %s185
      %188 = dma.vmem_to_hbm [thread:$0]  %s186, 16, %s4, [#allocation4]
    $region29: #{fastspeech2_loss.2} parent=1 // pred_fallthru
      _
    // Predicated region
    $region30: #{fastspeech2_loss.2} parent=1 // pred_check
      _
    $region31: #{fastspeech2_loss.2} parent=1 // pred_check_branch
      %190 = sbr.rel (0) target = $region33
    $region32: #{fastspeech2_loss.2} parent=1 // pred_region
      %s192 = ssub.s32 16, 16
      %193 = vsyncadd [#allocation7], %s192
      %s195 = sshll.u32 [#allocation6], 4
      %s196 = int_to_ptr.vmem [resolvable:$true] %s195
      %198 = dma.vmem_to_hbm [thread:$0]  %s196, 16, %s5, [#allocation7]
    $region33: #{fastspeech2_loss.2} parent=1 // pred_fallthru
      _
    // Predicated region
    $region34: #{fastspeech2_loss.2} parent=1 // pred_check
      _
    $region35: #{fastspeech2_loss.2} parent=1 // pred_check_branch
      %200 = sbr.rel (0) target = $region37
    $region36: #{fastspeech2_loss.2} parent=1 // pred_region
      %s202 = ssub.s32 16, 16
      %203 = vsyncadd [#allocation7], %s202
      %s205 = sshll.u32 [#allocation8], 4
      %s206 = int_to_ptr.vmem [resolvable:$true] %s205
      %208 = dma.vmem_to_hbm [thread:$0]  %s206, 16, %s6, [#allocation7]
    $region37: #{fastspeech2_loss.2} parent=1 // pred_fallthru
      _
    // Predicated region
    $region38: #{fastspeech2_loss.2} parent=1 // pred_check
      _
    $region39: #{fastspeech2_loss.2} parent=1 // pred_check_branch
      %210 = sbr.rel (0) target = $region41
    $region40: #{fastspeech2_loss.2} parent=1 // pred_region
      %211 = dma.done [#allocation4], 16
    $region41: #{fastspeech2_loss.2} parent=1 // pred_fallthru
      _
    // Predicated region
    $region42: #{fastspeech2_loss.2} parent=1 // pred_check
      _
    $region43: #{fastspeech2_loss.2} parent=1 // pred_check_branch
      %213 = sbr.rel (0) target = $region45
    $region44: #{fastspeech2_loss.2} parent=1 // pred_region
      %214 = dma.done [#allocation7], 16
    $region45: #{fastspeech2_loss.2} parent=1 // pred_fallthru
      _
    // Predicated region
    $region46: #{fastspeech2_loss.2} parent=1 // pred_check
      _
    $region47: #{fastspeech2_loss.2} parent=1 // pred_check_branch
      %216 = sbr.rel (0) target = $region49
    $region48: #{fastspeech2_loss.2} parent=1 // pred_region
      %217 = dma.done [#allocation7], 16
    $region49: #{fastspeech2_loss.2} parent=1 // pred_fallthru
      _
    %218 = vsyncpa [#allocation3], 1
    %219 = vsyncpa [#allocation4], 1
    %220 = vsyncpa [#allocation7], 1

</llo_original>
